<compile_context>
chip_gen: v6e
topology: v6e:2x2x1
jax: 0.10.0
libtpu: 0.0.40
codegen_flags: <defaults>
</compile_context>

<pallas_src>
import jax
import jax.numpy as jnp
from jax.experimental import pallas as pl
from jax.experimental.pallas import tpu as pltpu

LAYER_NORM_EPS = 1e-7  # DeBERTa default config.layer_norm_eps


def _round_up(x, m):
    return ((x + m - 1) // m) * m


def _default_vmem_limit():
    """Generation-aware scoped-VMEM budget (leave headroom on v7x's 64 MiB)."""
    try:
        cap = pltpu.get_tpu_info().vmem_capacity_bytes
    except Exception:
        cap = 128 << 20  # assume v5e/v6e-class if query unavailable
    if cap <= (64 << 20):          # v7x: 64 MiB per TensorCore
        return cap - (16 << 20)    # ~48 MiB, keep room for Mosaic scratch/spills
    return 64 << 20                # v5e / v6e: 128 MiB physical


def _bert_output_kernel(x_ref, res_ref, wt_ref, b_ref, g_ref, beta_ref, o_ref):
    # x_ref:   (TM, I)  hidden_states row tile (intermediate activations)
    # res_ref: (TM, H)  input_states (residual) row tile
    # wt_ref:  (I, H)   dense weight, pre-transposed so y = x @ wt + b
    # b_ref:   (1, H)   dense bias      (f32)
    # g_ref:   (1, H)   LayerNorm gamma (f32)
    # beta_ref:(1, H)   LayerNorm beta  (f32)

    # Dense: native-dtype operands on the MXU (bf16 in production), f32 accumulation.
    y = jnp.dot(x_ref[...], wt_ref[...], preferred_element_type=jnp.float32)

    # Dropout: identity in eval/inference mode.
    # TODO(synk): training-mode stochastic dropout (StableDropout) not implemented.

    # Bias + residual add, all in f32.
    y = y + b_ref[...] + res_ref[...].astype(jnp.float32)

    # LayerNorm over the hidden axis: one-pass statistics (E[y^2] - mean^2),
    # gamma folded into the rsqrt scale, everything in f32.
    mean = jnp.mean(y, axis=-1, keepdims=True)
    mean_sq = jnp.mean(y * y, axis=-1, keepdims=True)
    var = jnp.maximum(mean_sq - mean * mean, 0.0)
    inv = jax.lax.rsqrt(var + LAYER_NORM_EPS)          # (TM, 1)
    out = (y - mean) * (inv * g_ref[...]) + beta_ref[...]

    # TODO(synk): optional skewed-epilogue pipeline (hide LN under next tile's
    # MXU work via a persistent f32 scratch) left out for simplicity.

    o_ref[...] = out.astype(o_ref.dtype)


def bert_output(hidden_states, input_states, w_t, b, gamma, beta,
                *, tile_m=512, vmem_limit_bytes=None):
    """Fused dense + residual + LayerNorm (BertOutput forward, eval mode).

    hidden_states: [B, S, I]   (output of the intermediate FFN layer)
    input_states : [B, S, H]   (residual stream)
    w_t          : [I, H]      dense weight, ALREADY transposed (do w.T once at
                               parameter-load time, not per call)
    b, gamma, beta: [H]

    Production path: pass bf16 hidden_states/input_states/w_t; accumulation and
    LayerNorm statistics stay in f32 inside the kernel.
    """
    B, S, I = hidden_states.shape
    Bi, Si, H = input_states.shape
    assert (B, S) == (Bi, Si)
    assert w_t.shape == (I, H)

    N = B * S
    x2 = hidden_states.reshape(N, I)
    r2 = input_states.reshape(N, H)
    out_dtype = input_states.dtype

    # Sublane pack for the activation dtype: 8 (f32), 16 (bf16/f16), 32 (int8/fp8).
    pack = 8 * max(1, 4 // jnp.dtype(hidden_states.dtype).itemsize)

    # Clamp the row tile to the (pack-rounded) row count; keep tm a pack multiple.
    tm = min(tile_m, _round_up(N, pack))
    # Megacore balance (v7x has 2 TCs): prefer >= 2 row tiles when N permits,
    # by shrinking the tile rather than running a single fat tile.
    if tm >= N and N > pack:
        tm = _round_up(pl.cdiv(N, 2), pack)
    grid = (pl.cdiv(N, tm),)  # ragged tail handled by Pallas (OOB rows not written)

    # Hoist small-param casts out of the kernel (done once here).
    b2 = b.reshape(1, H).astype(jnp.float32)
    g2 = gamma.reshape(1, H).astype(jnp.float32)
    beta2 = beta.reshape(1, H).astype(jnp.float32)

    if vmem_limit_bytes is None:
        vmem_limit_bytes = _default_vmem_limit()

    # Advisory cost estimate so XLA schedules neighboring ops sensibly.
    bytes_accessed = (x2.size * x2.dtype.itemsize
                      + r2.size * r2.dtype.itemsize
                      + N * H * jnp.dtype(out_dtype).itemsize
                      + w_t.size * w_t.dtype.itemsize
                      + 3 * H * 4)
    cost = pl.CostEstimate(flops=2 * N * I * H,
                           transcendentals=N,
                           bytes_accessed=bytes_accessed)

    # TODO(synk): K-split (second "arbitrary" grid axis over I with an f32 acc
    # scratch) only needed as a v7x fallback when the resident weight cannot fit
    # VMEM even in bf16; not implemented here.

    single = pl.Buffered(1)  # constant-index operands: DMA once, single buffer
    out = pl.pallas_call(
        _bert_output_kernel,
        out_shape=jax.ShapeDtypeStruct((N, H), out_dtype),
        grid_spec=pltpu.PrefetchScalarGridSpec(
            num_scalar_prefetch=0,
            grid=grid,
            in_specs=[
                pl.BlockSpec((tm, I), lambda i: (i, 0)),   # hidden_states tile
                pl.BlockSpec((tm, H), lambda i: (i, 0)),   # residual tile
                pl.BlockSpec((I, H), lambda i: (0, 0), pipeline_mode=single),  # weight (resident)
                pl.BlockSpec((1, H), lambda i: (0, 0), pipeline_mode=single),  # dense bias
                pl.BlockSpec((1, H), lambda i: (0, 0), pipeline_mode=single),  # LN gamma
                pl.BlockSpec((1, H), lambda i: (0, 0), pipeline_mode=single),  # LN beta
            ],
            out_specs=pl.BlockSpec((tm, H), lambda i: (i, 0)),
        ),
        compiler_params=pltpu.CompilerParams(
            dimension_semantics=("parallel",),   # row grid shards across TCs (v7x)
            vmem_limit_bytes=vmem_limit_bytes,
        ),
        cost_estimate=cost,
    )(x2, r2, w_t, b2, g2, beta2)

    return out.reshape(B, S, H)


def _reference(hidden_states, input_states, w_t, b, gamma, beta):
    y = jnp.einsum("bsi,ih->bsh", hidden_states.astype(jnp.float32),
                   w_t.astype(jnp.float32)) + b
    y = y + input_states.astype(jnp.float32)
    mean = jnp.mean(y, axis=-1, keepdims=True)
    var = jnp.mean((y - mean) ** 2, axis=-1, keepdims=True)
    return (y - mean) * jax.lax.rsqrt(var + LAYER_NORM_EPS) * gamma + beta


if __name__ == "__main__":
    # Small shapes consistent with BertOutput: intermediate_size I -> hidden_size H.
    B, S, H = 2, 8, 32
    I = 4 * H  # 128

    key = jax.random.PRNGKey(0)
    k1, k2, k3, k4 = jax.random.split(key, 4)

    hidden_states = jax.random.normal(k1, (B, S, I), dtype=jnp.float32)
    input_states = jax.random.normal(k2, (B, S, H), dtype=jnp.float32)

    # Synthetic parameters (PyTorch nn.Linear weight layout is (out, in) = (H, I)).
    w = jax.random.normal(k3, (H, I), dtype=jnp.float32) * (1.0 / jnp.sqrt(I))
    b = jax.random.normal(k4, (H,), dtype=jnp.float32) * 0.01
    gamma = jnp.ones((H,), dtype=jnp.float32)
    beta = jnp.zeros((H,), dtype=jnp.float32)

    # Transpose ONCE at parameter-load time (kept out of the per-call hot path).
    w_t = jnp.asarray(w.T)

    ref = _reference(hidden_states, input_states, w_t, b, gamma, beta)

    # f32 path (tight correctness check).
    out = jax.block_until_ready(
        bert_output(hidden_states, input_states, w_t, b, gamma, beta))
    assert out.shape == (B, S, H)
    assert jnp.allclose(out, ref.astype(out.dtype), atol=1e-4, rtol=1e-4), \
        "f32 mismatch vs reference"

    # bf16 production path: bf16 operands on the MXU, f32 accumulation + LN.
    out_bf16 = jax.block_until_ready(
        bert_output(hidden_states.astype(jnp.bfloat16),
                    input_states.astype(jnp.bfloat16),
                    w_t.astype(jnp.bfloat16), b, gamma, beta))
    assert out_bf16.dtype == jnp.bfloat16
    assert jnp.allclose(out_bf16.astype(jnp.float32), ref, atol=8e-2, rtol=8e-2), \
        "bf16 mismatch vs reference"

    print("KERNEL_OK")
</pallas_src>

<mosaic_0001>
module attributes {stable_mosaic.version = 11 : i64} {
  func.func @_bert_output_kernel(%arg0: i32, %arg1: memref<8x128xf32, #tpu.memory_space<vmem>>, %arg2: memref<8x32xf32, #tpu.memory_space<vmem>>, %arg3: memref<128x32xf32, #tpu.memory_space<vmem>>, %arg4: memref<1x32xf32, #tpu.memory_space<vmem>>, %arg5: memref<1x32xf32, #tpu.memory_space<vmem>>, %arg6: memref<1x32xf32, #tpu.memory_space<vmem>>, %arg7: memref<8x32xf32, #tpu.memory_space<vmem>>) attributes {dimension_semantics = [#tpu.dimension_semantics<parallel>], iteration_bounds = array<i64: 2>, scalar_prefetch = 0 : i64, scratch_operands = 0 : i64, tpu.core_type = #tpu.core_type<tc>, window_params = [{transform_indices = @transform_0, window_bounds = array<i64: 8, 128>}, {transform_indices = @transform_1, window_bounds = array<i64: 8, 32>}, {pipeline_mode = #tpu.pipeline_mode<synchronous>, transform_indices = @transform_2, window_bounds = array<i64: 128, 32>}, {pipeline_mode = #tpu.pipeline_mode<synchronous>, transform_indices = @transform_3, window_bounds = array<i64: 1, 32>}, {pipeline_mode = #tpu.pipeline_mode<synchronous>, transform_indices = @transform_4, window_bounds = array<i64: 1, 32>}, {pipeline_mode = #tpu.pipeline_mode<synchronous>, transform_indices = @transform_5, window_bounds = array<i64: 1, 32>}, {transform_indices = @transform_6, window_bounds = array<i64: 8, 32>}]} {
    %c0 = arith.constant 0 : index
    %c0_0 = arith.constant 0 : index
    %0 = vector.load %arg1[%c0, %c0_0] : memref<8x128xf32, #tpu.memory_space<vmem>>, vector<8x128xf32>
    %c0_1 = arith.constant 0 : index
    %c0_2 = arith.constant 0 : index
    %1 = vector.load %arg3[%c0_1, %c0_2] : memref<128x32xf32, #tpu.memory_space<vmem>>, vector<128x32xf32>
    %cst = arith.constant dense<0.000000e+00> : vector<8x32xf32>
    %2 = tpu.matmul %0, %1, %cst {dimension_numbers = #tpu.dot_dimension_numbers<[1], [0], [0], [1], [0, 0, 1, 1], [], []>} : vector<8x128xf32>, vector<128x32xf32>, vector<8x32xf32> -> vector<8x32xf32>
    %c0_3 = arith.constant 0 : index
    %c0_4 = arith.constant 0 : index
    %3 = vector.load %arg4[%c0_3, %c0_4] : memref<1x32xf32, #tpu.memory_space<vmem>>, vector<1x32xf32>
    %4 = vector.broadcast %3 : vector<1x32xf32> to vector<8x32xf32>
    %5 = arith.addf %2, %4 : vector<8x32xf32>
    %c0_5 = arith.constant 0 : index
    %c0_6 = arith.constant 0 : index
    %6 = vector.load %arg2[%c0_5, %c0_6] : memref<8x32xf32, #tpu.memory_space<vmem>>, vector<8x32xf32>
    %7 = arith.addf %5, %6 : vector<8x32xf32>
    %cst_7 = arith.constant dense<0.000000e+00> : vector<8xf32>
    %8 = vector.multi_reduction <add>, %7, %cst_7 [1] : vector<8x32xf32> to vector<8xf32>
    %9 = vector.shape_cast %8 : vector<8xf32> to vector<8x1xf32>
    %cst_8 = arith.constant 3.200000e+01 : f32
    %10 = vector.broadcast %cst_8 : f32 to vector<8x1xf32>
    %11 = arith.divf %9, %10 : vector<8x1xf32>
    %12 = arith.mulf %7, %7 : vector<8x32xf32>
    %cst_9 = arith.constant dense<0.000000e+00> : vector<8xf32>
    %13 = vector.multi_reduction <add>, %12, %cst_9 [1] : vector<8x32xf32> to vector<8xf32>
    %14 = vector.shape_cast %13 : vector<8xf32> to vector<8x1xf32>
    %cst_10 = arith.constant 3.200000e+01 : f32
    %15 = vector.broadcast %cst_10 : f32 to vector<8x1xf32>
    %16 = arith.divf %14, %15 : vector<8x1xf32>
    %17 = arith.mulf %11, %11 : vector<8x1xf32>
    %18 = arith.subf %16, %17 : vector<8x1xf32>
    %cst_11 = arith.constant 0.000000e+00 : f32
    %19 = vector.broadcast %cst_11 : f32 to vector<8x1xf32>
    %20 = arith.maximumf %18, %19 : vector<8x1xf32>
    %cst_12 = arith.constant 1.000000e-07 : f32
    %21 = vector.broadcast %cst_12 : f32 to vector<8x1xf32>
    %22 = arith.addf %20, %21 : vector<8x1xf32>
    %23 = math.rsqrt %22 : vector<8x1xf32>
    %24 = vector.broadcast %11 : vector<8x1xf32> to vector<8x32xf32>
    %25 = arith.subf %7, %24 : vector<8x32xf32>
    %c0_13 = arith.constant 0 : index
    %c0_14 = arith.constant 0 : index
    %26 = vector.load %arg5[%c0_13, %c0_14] : memref<1x32xf32, #tpu.memory_space<vmem>>, vector<1x32xf32>
    %27 = vector.broadcast %23 : vector<8x1xf32> to vector<8x32xf32>
    %28 = vector.broadcast %26 : vector<1x32xf32> to vector<8x32xf32>
    %29 = arith.mulf %27, %28 : vector<8x32xf32>
    %30 = arith.mulf %25, %29 : vector<8x32xf32>
    %c0_15 = arith.constant 0 : index
    %c0_16 = arith.constant 0 : index
    %31 = vector.load %arg6[%c0_15, %c0_16] : memref<1x32xf32, #tpu.memory_space<vmem>>, vector<1x32xf32>
    %32 = vector.broadcast %31 : vector<1x32xf32> to vector<8x32xf32>
    %33 = arith.addf %30, %32 : vector<8x32xf32>
    %c0_17 = arith.constant 0 : index
    %c0_18 = arith.constant 0 : index
    %34 = vector.load %arg7[%c0_17, %c0_18] : memref<8x32xf32, #tpu.memory_space<vmem>>, vector<8x32xf32>
    tpu.vector_store %arg7[%c0_17, %c0_18], %33 {strides = array<i32>} : memref<8x32xf32, #tpu.memory_space<vmem>>, vector<8x32xf32>,
    return
  }
  func.func @transform_0(%arg0: i32) -> (i32, i32) {
    %c0_i32 = arith.constant 0 : i32
    %c0_i32_0 = arith.constant 0 : i32
    return %arg0, %c0_i32 : i32, i32
  }
  func.func @transform_1(%arg0: i32) -> (i32, i32) {
    %c0_i32 = arith.constant 0 : i32
    %c0_i32_0 = arith.constant 0 : i32
    return %arg0, %c0_i32 : i32, i32
  }
  func.func @transform_2(%arg0: i32) -> (i32, i32) {
    %c0_i32 = arith.constant 0 : i32
    %c0_i32_0 = arith.constant 0 : i32
    %c0_i32_1 = arith.constant 0 : i32
    return %c0_i32, %c0_i32_0 : i32, i32
  }
  func.func @transform_3(%arg0: i32) -> (i32, i32) {
    %c0_i32 = arith.constant 0 : i32
    %c0_i32_0 = arith.constant 0 : i32
    %c0_i32_1 = arith.constant 0 : i32
    return %c0_i32, %c0_i32_0 : i32, i32
  }
  func.func @transform_4(%arg0: i32) -> (i32, i32) {
    %c0_i32 = arith.constant 0 : i32
    %c0_i32_0 = arith.constant 0 : i32
    %c0_i32_1 = arith.constant 0 : i32
    return %c0_i32, %c0_i32_0 : i32, i32
  }
  func.func @transform_5(%arg0: i32) -> (i32, i32) {
    %c0_i32 = arith.constant 0 : i32
    %c0_i32_0 = arith.constant 0 : i32
    %c0_i32_1 = arith.constant 0 : i32
    return %c0_i32, %c0_i32_0 : i32, i32
  }
  func.func @transform_6(%arg0: i32) -> (i32, i32) {
    %c0_i32 = arith.constant 0 : i32
    %c0_i32_0 = arith.constant 0 : i32
    return %arg0, %c0_i32 : i32, i32
  }
}

</mosaic_0001>

<llo_original>
// kernel: tpu_custom_call.1
$region0: #{tpu_custom_call.1}
  #allocation0 [shape = 'u32[]', space=smem, size = 0x4, offset = 0x4, fixed_abs, tag = 'smem constant byte address 0x4 - core index']
  #allocation1 [shape = 'u32[144,128]{1,0:T(1,128)}', space=vmem, size = 0x12000, scoped, tag = 'internal scratch']
  %s0 = inlined_call_operand.vmem [shape: f32[16,128], index: 0, kind: input, shape index: {}]
  %s1 = inlined_call_operand.vmem [shape: f32[16,32], index: 1, kind: input, shape index: {}]
  %s2 = inlined_call_operand.vmem [shape: f32[128,32], index: 2, kind: input, shape index: {}]
  %s3 = inlined_call_operand.vmem [shape: f32[1,32], index: 3, kind: input, shape index: {}]
  %s4 = inlined_call_operand.vmem [shape: f32[1,32], index: 4, kind: input, shape index: {}]
  %s5 = inlined_call_operand.vmem [shape: f32[1,32], index: 5, kind: input, shape index: {}]
  %s6 = inlined_call_operand.hbm [shape: f32[16,32], index: 6, kind: output, shape index: {}]
  %s7 = sld [smem:[#allocation0]]
  $region57: #{tpu_custom_call.1} parent=0
    _
  %s9 = ssub.s32 1, %s7
  %s10 = scalar_select 0, %s9, %s7
  $region1: #{tpu_custom_call.1} parent=0
    #allocation2 [shape = 'u8[8192]{0}', space=vmem, size = 0x2000, scoped, tag = 'output window, operand 0']
    #allocation3 [shape = 's32[2]{0}', space=sflag, size = 0x8, scoped, tag = 'scoped memory for tpu_custom_call.1']
    %11 = vsyncpa [#allocation3], 0
    %s12 = scalar_lea.sflag [#allocation3], 1
    %13 = vsyncpa %s12, 0
    loop: start=0, step=1, limit=4
    $region2: #{tpu_custom_call.1} parent=1 // loop_pre_header
      _
    $region3: #{tpu_custom_call.1} parent=1 // loop_header
      %s15 = sphi 0, %s19
      %p16 = scmp.ge.s32.totalorder %s15, 4
      %s25 = sphi 0, %s27
      %s28 = sphi 0, %s25
      %s29 = sphi 0, %s28
      %s45 = sphi 0, %s29
      %s51 = sphi 0, %s53
      %s54 = sphi 0, %s51
      %s55 = sphi 0, %s54
      %s71 = sphi 0, %s55
      %s75 = sphi 0, %s75
      %s77 = sphi 0, %s75
      %s78 = sphi 0, %s77
      %s92 = sphi 0, %s78
      %s96 = sphi 0, %s96
      %s98 = sphi 0, %s96
      %s99 = sphi 0, %s98
      %s113 = sphi 0, %s99
      %s117 = sphi 0, %s117
      %s119 = sphi 0, %s117
      %s120 = sphi 0, %s119
      %s134 = sphi 0, %s120
      %s138 = sphi 0, %s138
      %s140 = sphi 0, %s138
      %s141 = sphi 0, %s140
      %s155 = sphi 0, %s141
      %s161 = sphi 0, %s163
      %s164 = sphi 0, %s161
      %s165 = sphi 0, %s164
      %s181 = sphi 0, %s165
    $region4: #{tpu_custom_call.1} parent=1 // loop_header_branch
      %18 = sbr.rel (%p16) target = $region8
    $region5: #{tpu_custom_call.1} parent=1 // loop_body
      %s20 = ssub.s32 %s15, 1
      %s21 = ssub.s32 %s15, 2
      %s22 = sadd.s32 %s15, 1
      %s23 = ssub.s32 %s15, %s22
      %p24 = scmp.eq.s32.totalorder %s23, 0
      %s26 = sadd.s32 %s25, 1
      %s27 = scalar_select %p24, %s25, %s26
      %p30 = pneg %p24
      %p31 = scmp.eq.s32.totalorder %s15, 1
      %p32 = por %p30, %p31
      %p33 = scmp.ne.s32.totalorder %s25, %s28
      %p34 = scmp.eq.s32.totalorder %s15, 0
      %p35 = por %p33, %p34
      %p36 = scmp.ne.s32.totalorder %s25, %s28
      %p37 = scmp.eq.s32.totalorder %s20, 1
      %p38 = por %p36, %p37
      %p39 = scmp.ne.s32.totalorder %s28, %s29
      %p40 = scmp.eq.s32.totalorder %s20, 0
      %p41 = por %p39, %p40
      %p42 = scmp.ne.s32.totalorder %s28, %s29
      %p43 = scmp.eq.s32.totalorder %s21, 1
      %p44 = por %p42, %p43
      %p46 = scmp.ne.s32.totalorder %s29, %s45
      %p47 = scmp.eq.s32.totalorder %s21, 0
      %p48 = por %p46, %p47
      %s49 = ssub.s32 %s15, %s22
      %p50 = scmp.eq.s32.totalorder %s49, 0
      %s52 = sadd.s32 %s51, 1
      %s53 = scalar_select %p50, %s51, %s52
      %p56 = pneg %p50
      %p57 = scmp.eq.s32.totalorder %s15, 1
      %p58 = por %p56, %p57
      %p59 = scmp.ne.s32.totalorder %s51, %s54
      %p60 = scmp.eq.s32.totalorder %s15, 0
      %p61 = por %p59, %p60
      %p62 = scmp.ne.s32.totalorder %s51, %s54
      %p63 = scmp.eq.s32.totalorder %s20, 1
      %p64 = por %p62, %p63
      %p65 = scmp.ne.s32.totalorder %s54, %s55
      %p66 = scmp.eq.s32.totalorder %s20, 0
      %p67 = por %p65, %p66
      %p68 = scmp.ne.s32.totalorder %s54, %s55
      %p69 = scmp.eq.s32.totalorder %s21, 1
      %p70 = por %p68, %p69
      %p72 = scmp.ne.s32.totalorder %s55, %s71
      %p73 = scmp.eq.s32.totalorder %s21, 0
      %p74 = por %p72, %p73
      %s76 = sadd.s32 %s75, 1
      %p79 = scmp.eq.s32.totalorder %s15, 1
      %p80 = scmp.ne.s32.totalorder %s75, %s77
      %p81 = scmp.eq.s32.totalorder %s15, 0
      %p82 = por %p80, %p81
      %p83 = scmp.ne.s32.totalorder %s75, %s77
      %p84 = scmp.eq.s32.totalorder %s20, 1
      %p85 = por %p83, %p84
      %p86 = scmp.ne.s32.totalorder %s77, %s78
      %p87 = scmp.eq.s32.totalorder %s20, 0
      %p88 = por %p86, %p87
      %p89 = scmp.ne.s32.totalorder %s77, %s78
      %p90 = scmp.eq.s32.totalorder %s21, 1
      %p91 = por %p89, %p90
      %p93 = scmp.ne.s32.totalorder %s78, %s92
      %p94 = scmp.eq.s32.totalorder %s21, 0
      %p95 = por %p93, %p94
      %s97 = sadd.s32 %s96, 1
      %p100 = scmp.eq.s32.totalorder %s15, 1
      %p101 = scmp.ne.s32.totalorder %s96, %s98
      %p102 = scmp.eq.s32.totalorder %s15, 0
      %p103 = por %p101, %p102
      %p104 = scmp.ne.s32.totalorder %s96, %s98
      %p105 = scmp.eq.s32.totalorder %s20, 1
      %p106 = por %p104, %p105
      %p107 = scmp.ne.s32.totalorder %s98, %s99
      %p108 = scmp.eq.s32.totalorder %s20, 0
      %p109 = por %p107, %p108
      %p110 = scmp.ne.s32.totalorder %s98, %s99
      %p111 = scmp.eq.s32.totalorder %s21, 1
      %p112 = por %p110, %p111
      %p114 = scmp.ne.s32.totalorder %s99, %s113
      %p115 = scmp.eq.s32.totalorder %s21, 0
      %p116 = por %p114, %p115
      %s118 = sadd.s32 %s117, 1
      %p121 = scmp.eq.s32.totalorder %s15, 1
      %p122 = scmp.ne.s32.totalorder %s117, %s119
      %p123 = scmp.eq.s32.totalorder %s15, 0
      %p124 = por %p122, %p123
      %p125 = scmp.ne.s32.totalorder %s117, %s119
      %p126 = scmp.eq.s32.totalorder %s20, 1
      %p127 = por %p125, %p126
      %p128 = scmp.ne.s32.totalorder %s119, %s120
      %p129 = scmp.eq.s32.totalorder %s20, 0
      %p130 = por %p128, %p129
      %p131 = scmp.ne.s32.totalorder %s119, %s120
      %p132 = scmp.eq.s32.totalorder %s21, 1
      %p133 = por %p131, %p132
      %p135 = scmp.ne.s32.totalorder %s120, %s134
      %p136 = scmp.eq.s32.totalorder %s21, 0
      %p137 = por %p135, %p136
      %s139 = sadd.s32 %s138, 1
      %p142 = scmp.eq.s32.totalorder %s15, 1
      %p143 = scmp.ne.s32.totalorder %s138, %s140
      %p144 = scmp.eq.s32.totalorder %s15, 0
      %p145 = por %p143, %p144
      %p146 = scmp.ne.s32.totalorder %s138, %s140
      %p147 = scmp.eq.s32.totalorder %s20, 1
      %p148 = por %p146, %p147
      %p149 = scmp.ne.s32.totalorder %s140, %s141
      %p150 = scmp.eq.s32.totalorder %s20, 0
      %p151 = por %p149, %p150
      %p152 = scmp.ne.s32.totalorder %s140, %s141
      %p153 = scmp.eq.s32.totalorder %s21, 1
      %p154 = por %p152, %p153
      %p156 = scmp.ne.s32.totalorder %s141, %s155
      %p157 = scmp.eq.s32.totalorder %s21, 0
      %p158 = por %p156, %p157
      %s159 = ssub.s32 %s15, %s22
      %p160 = scmp.eq.s32.totalorder %s159, 0
      %s162 = sadd.s32 %s161, 1
      %s163 = scalar_select %p160, %s161, %s162
      %p166 = pneg %p160
      %p167 = scmp.eq.s32.totalorder %s15, 1
      %p168 = por %p166, %p167
      %p169 = scmp.ne.s32.totalorder %s161, %s164
      %p170 = scmp.eq.s32.totalorder %s15, 0
      %p171 = por %p169, %p170
      %p172 = scmp.ne.s32.totalorder %s161, %s164
      %p173 = scmp.eq.s32.totalorder %s20, 1
      %p174 = por %p172, %p173
      %p175 = scmp.ne.s32.totalorder %s164, %s165
      %p176 = scmp.eq.s32.totalorder %s20, 0
      %p177 = por %p175, %p176
      %p178 = scmp.ne.s32.totalorder %s164, %s165
      %p179 = scmp.eq.s32.totalorder %s21, 1
      %p180 = por %p178, %p179
      %p182 = scmp.ne.s32.totalorder %s165, %s181
      %p183 = scmp.eq.s32.totalorder %s21, 0
      %p184 = por %p182, %p183
      %p185 = scmp.le.s32.totalorder 1, %s15
      %p186 = scmp.lt.s32.totalorder %s15, 3
      %p187 = pnand %p185, %p186
      %p188 = pneg %p187
      // Predicated region
      $region9: #{tpu_custom_call.1} parent=5 // pred_check
        _
      $region10: #{tpu_custom_call.1} parent=5 // pred_check_branch
        %190 = sbr.rel (%p187) target = $region12
      $region11: #{tpu_custom_call.1} parent=5 // pred_region
        %s191 = ssub.s32 %s15, 1
        // Predicated region
        $region13: #{tpu_custom_call.1} parent=11 // pred_check
          %p192 = pneg %p88
        $region14: #{tpu_custom_call.1} parent=11 // pred_check_branch
          %194 = sbr.rel (%p192) target = $region16
        $region15: #{tpu_custom_call.1} parent=11 // pred_region
          _
        $region16: #{tpu_custom_call.1} parent=11 // pred_fallthru
          _
        // Predicated region
        $region17: #{tpu_custom_call.1} parent=11 // pred_check
          %p195 = pneg %p109
        $region18: #{tpu_custom_call.1} parent=11 // pred_check_branch
          %197 = sbr.rel (%p195) target = $region20
        $region19: #{tpu_custom_call.1} parent=11 // pred_region
          _
        $region20: #{tpu_custom_call.1} parent=11 // pred_fallthru
          _
        // Predicated region
        $region21: #{tpu_custom_call.1} parent=11 // pred_check
          %p198 = pneg %p130
        $region22: #{tpu_custom_call.1} parent=11 // pred_check_branch
          %200 = sbr.rel (%p198) target = $region24
        $region23: #{tpu_custom_call.1} parent=11 // pred_region
          _
        $region24: #{tpu_custom_call.1} parent=11 // pred_fallthru
          _
        // Predicated region
        $region25: #{tpu_custom_call.1} parent=11 // pred_check
          %p201 = pneg %p151
        $region26: #{tpu_custom_call.1} parent=11 // pred_check_branch
          %203 = sbr.rel (%p201) target = $region28
        $region27: #{tpu_custom_call.1} parent=11 // pred_region
          _
        $region28: #{tpu_custom_call.1} parent=11 // pred_fallthru
          _
      $region12: #{tpu_custom_call.1} parent=5 // pred_fallthru
        _
      %p204 = scmp.lt.s32.totalorder %s15, 2
      // Predicated region
      $region29: #{tpu_custom_call.1} parent=5 // pred_check
        %p205 = pneg %p204
      $region30: #{tpu_custom_call.1} parent=5 // pred_check_branch
        %207 = sbr.rel (%p205) target = $region32
      $region31: #{tpu_custom_call.1} parent=5 // pred_region
        // Predicated region
        $region33: #{tpu_custom_call.1} parent=31 // pred_check
          %p208 = pneg %p35
        $region34: #{tpu_custom_call.1} parent=31 // pred_check_branch
          %210 = sbr.rel (%p208) target = $region36
        $region35: #{tpu_custom_call.1} parent=31 // pred_region
          %p211 = scmp.lt.s32.totalorder %s15, 1
          %s212 = scalar_select %p211, %s15, 1
          %s213 = smul.addr %s212, 8
          %s214 = scalar_lea.vmem %s0, %s213
        $region36: #{tpu_custom_call.1} parent=31 // pred_fallthru
          _
        // Predicated region
        $region37: #{tpu_custom_call.1} parent=31 // pred_check
          %p215 = pneg %p61
        $region38: #{tpu_custom_call.1} parent=31 // pred_check_branch
          %217 = sbr.rel (%p215) target = $region40
        $region39: #{tpu_custom_call.1} parent=31 // pred_region
          %p218 = scmp.lt.s32.totalorder %s15, 1
          %s219 = scalar_select %p218, %s15, 1
          %s220 = smul.addr %s219, 8
          %s221 = scalar_lea.vmem %s1, %s220
        $region40: #{tpu_custom_call.1} parent=31 // pred_fallthru
          _
      $region32: #{tpu_custom_call.1} parent=5 // pred_fallthru
        _
      %p222 = scmp.le.s32.totalorder 1, %s15
      %p223 = scmp.lt.s32.totalorder %s15, 3
      %p224 = pnand %p222, %p223
      %p225 = pneg %p224
      // Predicated region
      $region41: #{tpu_custom_call.1} parent=5 // pred_check
        _
      $region42: #{tpu_custom_call.1} parent=5 // pred_check_branch
        %227 = sbr.rel (%p224) target = $region44
      $region43: #{tpu_custom_call.1} parent=5 // pred_region
        %s228 = ssub.s32 %s15, 1
        %p229 = scmp.lt.s32.totalorder %s20, 1
        %s230 = scalar_select %p229, %s20, 1
        %s231 = smul.addr %s230, 8
        %s232 = scalar_lea.vmem %s0, %s231
        %p233 = pneg %p41
        %p234 = pneg %p38
        %p235 = scmp.lt.s32.totalorder %s20, 1
        %s236 = scalar_select %p235, %s20, 1
        %s237 = smul.addr %s236, 8
        %s238 = scalar_lea.vmem %s1, %s237
        %p239 = pneg %p67
        %p240 = pneg %p64
        %p241 = pneg %p88
        %p242 = pneg %p85
        %p243 = pneg %p109
        %p244 = pneg %p106
        %p245 = pneg %p130
        %p246 = pneg %p127
        %p247 = pneg %p151
        %p248 = pneg %p148
        %p249 = pneg %p177
        %p250 = pneg %p174
        %s251 = sand.u32 %s164, 1
        %s252 = scalar_lea.sflag [#allocation3], %s251
        %s253 = sand.u32 %s164, 1
        %s254 = smul.addr %s253, 8
        %s255 = scalar_lea.vmem [#allocation2], %s254
        %p256 = scmp.lt.s32.totalorder %s20, 1
        %s257 = scalar_select %p256, %s20, 1
        %s258 = smul.addr %s257, 8
        %s259 = scalar_lea.vmem %s0, %s258
        %p260 = scmp.lt.s32.totalorder %s20, 1
        %s261 = scalar_select %p260, %s20, 1
        %s262 = smul.addr %s261, 8
        %s263 = scalar_lea.vmem %s1, %s262
        %v264 = vld [vmem:[%s259] sm:$0xff]
        %v265 = vld [vmem:[%s2] sm:$0xff]
        %v266 = vld [vmem:[%s2 + $0x8] sm:$0xff]
        %v267 = vld [vmem:[%s2 + $0x10] sm:$0xff]
        %v268 = vld [vmem:[%s2 + $0x18] sm:$0xff]
        %v269 = vld [vmem:[%s2 + $0x20] sm:$0xff]
        %v270 = vld [vmem:[%s2 + $0x28] sm:$0xff]
        %v271 = vld [vmem:[%s2 + $0x30] sm:$0xff]
        %v272 = vld [vmem:[%s2 + $0x38] sm:$0xff]
        %v273 = vld [vmem:[%s2 + $0x40] sm:$0xff]
        %v274 = vld [vmem:[%s2 + $0x48] sm:$0xff]
        %v275 = vld [vmem:[%s2 + $0x50] sm:$0xff]
        %v276 = vld [vmem:[%s2 + $0x58] sm:$0xff]
        %v277 = vld [vmem:[%s2 + $0x60] sm:$0xff]
        %v278 = vld [vmem:[%s2 + $0x68] sm:$0xff]
        %v279 = vld [vmem:[%s2 + $0x70] sm:$0xff]
        %v280 = vld [vmem:[%s2 + $0x78] sm:$0xff]
        %v281 = vld [vmem:[%s3] sm:$0x1]
        %v283 = vlaneseq
        %v284 = vshrl.u32 %v283, 7
        %v285 = vsub.s32 0, %v284
        %v286 = vrot.slane %v281, %v285
        %288 = vmatprep.subr.mxu0 0.0
        %289 = vmatpush1.msra.mxu0 %v280
        %290 = vmatprep.subr.mxu0 0.0
        %291 = vmatpush1.msra.mxu0 %v279
        %292 = vmatprep.subr.mxu0 0.0
        %293 = vmatpush1.msra.mxu0 %v278
        %294 = vmatprep.subr.mxu0 0.0
        %295 = vmatpush1.msra.mxu0 %v277
        %296 = vmatprep.subr.mxu0 0.0
        %297 = vmatpush1.msra.mxu0 %v276
        %298 = vmatprep.subr.mxu0 0.0
        %299 = vmatpush1.msra.mxu0 %v275
        %300 = vmatprep.subr.mxu0 0.0
        %301 = vmatpush1.msra.mxu0 %v274
        %302 = vmatprep.subr.mxu0 0.0
        %303 = vmatpush1.msra.mxu0 %v273
        %304 = vmatprep.subr.mxu0 0.0
        %305 = vmatpush1.msra.mxu0 %v272
        %306 = vmatprep.subr.mxu0 0.0
        %307 = vmatpush1.msra.mxu0 %v271
        %308 = vmatprep.subr.mxu0 0.0
        %309 = vmatpush1.msra.mxu0 %v270
        %310 = vmatprep.subr.mxu0 0.0
        %311 = vmatpush1.msra.mxu0 %v269
        %312 = vmatprep.subr.mxu0 0.0
        %313 = vmatpush1.msra.mxu0 %v268
        %314 = vmatprep.subr.mxu0 0.0
        %315 = vmatpush1.msra.mxu0 %v267
        %316 = vmatprep.subr.mxu0 0.0
        %317 = vmatpush1.msra.mxu0 %v266
        %318 = vmatprep.subr.mxu0 0.0
        %319 = vmatpush1.msra.mxu0 %v265
        %320 = vmatprep.subr.mxu0 0.0
        %321 = vmatpush2.msra.mxu0 0.0
        %322 = vmatprep.subr.mxu0 0.0
        %323 = vmatpush2.msra.mxu0 0.0
        %324 = vmatprep.subr.mxu0 0.0
        %325 = vmatpush2.msra.mxu0 0.0
        %326 = vmatprep.subr.mxu0 0.0
        %327 = vmatpush2.msra.mxu0 0.0
        %328 = vmatprep.subr.mxu0 0.0
        %329 = vmatpush2.msra.mxu0 0.0
        %330 = vmatprep.subr.mxu0 0.0
        %331 = vmatpush2.msra.mxu0 0.0
        %332 = vmatprep.subr.mxu0 0.0
        %333 = vmatpush2.msra.mxu0 0.0
        %334 = vmatprep.subr.mxu0 0.0
        %335 = vmatpush2.msra.mxu0 0.0
        %336 = vmatprep.subr.mxu0 0.0
        %337 = vmatpush2.msra.mxu0 0.0
        %338 = vmatprep.subr.mxu0 0.0
        %339 = vmatpush2.msra.mxu0 0.0
        %340 = vmatprep.subr.mxu0 0.0
        %341 = vmatpush2.msra.mxu0 0.0
        %342 = vmatprep.subr.mxu0 0.0
        %343 = vmatpush2.msra.mxu0 0.0
        %344 = vmatprep.subr.mxu0 0.0
        %345 = vmatpush2.msra.mxu0 0.0
        %346 = vmatprep.subr.mxu0 0.0
        %347 = vmatpush2.msra.mxu0 0.0
        %348 = vmatprep.subr.mxu0 0.0
        %349 = vmatpush2.msra.mxu0 0.0
        %350 = vmatprep.subr.mxu0 0.0
        %351 = vmatpush2.msra.mxu0 0.0
        %352 = vmatprep.mubr.f32.mxu0 0.0
        %353 = vmatmul.mubr.f32.gmra.mxu0 %v264
        %v354 = vpop.f32.mrf.mxu0
        %v355 = vadd.f32 %v286, %v354
        %v356 = vpop.f32.mrf.mxu0
        %357 = vdwg.mxu0
        %v358 = vld [vmem:[%s263] sm:$0xff]
        %v359 = vadd.f32 %v355, %v358
        %vm360 = vcmask 261120
        %v361 = vsel %vm360, %v359, 0.0
        %362 = vadd.xlane.f32.xlu0 %v361
        %v363 = vpop.xlane.xlu0 %362
        %v364 = vrcp.pop 32.0
        %v365 = vmul.f32 %v363, %v364
        %v366 = vmul.f32 %v359, %v359
        %v367 = vsel %vm360, %v366, 0.0
        %368 = vadd.xlane.f32.xlu0 %v367
        %v369 = vpop.xlane.xlu0 %368
        %v370 = vmul.f32 %v369, %v364
        %v371 = vmul.f32 %v365, %v365
        %v372 = vsub.f32 %v370, %v371
        %v373 = vmax.f32 %v372, 0.0
        %v374 = vadd.f32 %v373, 1e-07
        %v375 = vrsqrt.pop %v374
        %v376 = vsub.f32 %v359, %v365
        %v377 = vld [vmem:[%s4] sm:$0x1]
        %v379 = vlaneseq
        %v380 = vshrl.u32 %v379, 7
        %v381 = vsub.s32 0, %v380
        %v382 = vrot.slane %v377, %v381
        %v384 = vmul.f32 %v375, %v382
        %v385 = vmul.f32 %v376, %v384
        %v386 = vld [vmem:[%s5] sm:$0x1]
        %v388 = vlaneseq
        %v389 = vshrl.u32 %v388, 7
        %v390 = vsub.s32 0, %v389
        %v391 = vrot.slane %v386, %v390
        %v393 = vadd.f32 %v385, %v391
        %394 = vst.msk [vmem:[%s255] sm:$0xff] %vm360, %v393
        %s395 = sand.u32 %s164, 1
        %s396 = scalar_lea.sflag [#allocation3], %s395
        %s397 = sand.u32 %s164, 1
        %s398 = smul.addr %s397, 8
        %s399 = scalar_lea.vmem [#allocation2], %s398
        // Predicated region
        $region45: #{tpu_custom_call.1} parent=43 // pred_check
          %p400 = pneg %p174
        $region46: #{tpu_custom_call.1} parent=43 // pred_check_branch
          %402 = sbr.rel (%p400) target = $region48
        $region47: #{tpu_custom_call.1} parent=43 // pred_region
          %s404 = ssub.s32 128, 128
          %405 = vsyncadd %s396, %s404
          %s406 = smul.addr %s20, 128
          %s407 = scalar_lea.hbm %s6, %s406
          %s409 = sshll.u32 %s399, 4
          %s410 = int_to_ptr.vmem [resolvable:$true] %s409
          %412 = dma.vmem_to_hbm [thread:$0]  %s410, 128, %s407, %s396
        $region48: #{tpu_custom_call.1} parent=43 // pred_fallthru
          _
      $region44: #{tpu_custom_call.1} parent=5 // pred_fallthru
        _
      %p413 = scmp.le.s32.totalorder 2, %s15
      // Predicated region
      $region49: #{tpu_custom_call.1} parent=5 // pred_check
        %p414 = pneg %p413
      $region50: #{tpu_custom_call.1} parent=5 // pred_check_branch
        %416 = sbr.rel (%p414) target = $region52
      $region51: #{tpu_custom_call.1} parent=5 // pred_region
        %s417 = ssub.s32 %s15, 2
        // Predicated region
        $region53: #{tpu_custom_call.1} parent=51 // pred_check
          %p418 = pneg %p180
        $region54: #{tpu_custom_call.1} parent=51 // pred_check_branch
          %420 = sbr.rel (%p418) target = $region56
        $region55: #{tpu_custom_call.1} parent=51 // pred_region
          %s421 = sand.u32 %s165, 1
          %s422 = scalar_lea.sflag [#allocation3], %s421
          %s423 = sand.u32 %s165, 1
          %s424 = smul.addr %s423, 8
          %s425 = scalar_lea.vmem [#allocation2], %s424
          %426 = dma.done %s422, 128
        $region56: #{tpu_custom_call.1} parent=51 // pred_fallthru
          _
      $region52: #{tpu_custom_call.1} parent=5 // pred_fallthru
        _
    $region6: #{tpu_custom_call.1} parent=1 // loop_footer
      %s19 = sadd.s32 1, %s15
    $region7: #{tpu_custom_call.1} parent=1 // loop_footer_branch
      %14 = sbr.rel target = $region3
    $region8: #{tpu_custom_call.1} parent=1 // loop_exit
      _
    %427 = vsyncpa [#allocation3], 1
    %s428 = scalar_lea.sflag [#allocation3], 1
    %429 = vsyncpa %s428, 1

</llo_original>
